<compile_context>
chip_gen: v7x
topology: tpu7x:2x2x1
jax: 0.10.0
libtpu: 0.0.40
codegen_flags: <defaults>
</compile_context>

<pallas_src>
import functools

import jax
import jax.numpy as jnp
from jax.experimental import pallas as pl
from jax.experimental.pallas import tpu as pltpu


def _vmem_limit_bytes():
    """Scoped-VMEM limit: as large as the chip allows, with headroom."""
    cap = 64 * 1024 * 1024  # conservative default (v7x physical VMEM)
    try:
        cap = int(pltpu.get_tpu_info().vmem_capacity_bytes)
    except Exception:
        pass
    return max(32 * 1024 * 1024, min(cap - 16 * 1024 * 1024, 100 * 1024 * 1024))


def _pow_term(x, power):
    """x**power via repeated multiplies (VPU) for positive integer powers."""
    if isinstance(power, int) and power >= 1:
        result = None
        base = x
        e = power
        while e:
            if e & 1:
                result = base if result is None else result * base
            e >>= 1
            if e:
                base = base * base
        return result
    return jnp.power(x, power)  # fractional exponents: EUP path


# ---------------------------------------------------------------------------
# Fast path: D % 128 == 0, inputs viewed as [N, D//128, 128] (sublane-dense).
# ---------------------------------------------------------------------------
def _dice_dense_kernel(p_ref, t_ref, loss_ref, num_acc, den_acc, *,
                       smooth, power, c_total, t_chunk, need_mask):
    # grid = (batch, feature_chunks); reduction axis is last ("arbitrary").
    k = pl.program_id(1)

    @pl.when(k == 0)
    def _init():
        num_acc[...] = jnp.zeros_like(num_acc)
        den_acc[...] = jnp.zeros_like(den_acc)

    p = p_ref[0].astype(jnp.float32)      # (t_chunk, 128), lane+sublane dense
    t = t_ref[0].astype(jnp.float32)

    prod = p * t
    den_part = _pow_term(p, power) + _pow_term(t, power)

    if need_mask:
        # Ragged last chunk: zero out sublane-rows past the end of the
        # feature axis (out-of-bounds tile data is discarded by the where).
        row = jax.lax.broadcasted_iota(jnp.int32, (t_chunk, 128), 0)
        valid = (k * t_chunk + row) < c_total
        prod = jnp.where(valid, prod, 0.0)
        den_part = jnp.where(valid, den_part, 0.0)

    # Fold t_chunk sublane-rows into the (8, 128) accumulators with pure
    # elementwise vreg adds (VPU); t_chunk is a static multiple of 8, so the
    # reshape stays on (8, 128) tile boundaries (no layout shuffle).
    num_acc[...] += prod.reshape(t_chunk // 8, 8, 128).sum(axis=0)
    den_acc[...] += den_part.reshape(t_chunk // 8, 8, 128).sum(axis=0)

    @pl.when(k == pl.num_programs(1) - 1)
    def _finalize():
        num = jnp.sum(jnp.sum(num_acc[...], axis=0, keepdims=True),
                      axis=1, keepdims=True) + smooth
        den = jnp.sum(jnp.sum(den_acc[...], axis=0, keepdims=True),
                      axis=1, keepdims=True) + smooth
        # Lane-dense (128-wide) store; wrapper reads [:, 0, 0].
        loss_ref[0] = jnp.broadcast_to(1.0 - num / den, (1, 128))


def _dice_dense(predict, target, smooth, power, vmem_limit):
    n, d = predict.shape
    c = d // 128
    predict3 = predict.reshape(n, c, 128)   # free row-major view
    target3 = target.reshape(n, c, 128)

    itemsize = max(jnp.dtype(predict.dtype).itemsize,
                   jnp.dtype(target.dtype).itemsize)
    # Per sublane-row of a chunk: 2 inputs x 2 pipeline buffers x 128 lanes.
    per_row_bytes = 2 * 2 * 128 * itemsize
    # Cap at 4096 rows (~2 MiB / buffer / input for f32): per-step DMA is
    # already >> the ~0.35us step overhead, and it keeps comfortable headroom
    # inside v7x's 64 MiB VMEM.
    t_cap = max(8, min((vmem_limit // 2) // per_row_bytes, 4096))
    t_chunk = int(min((c // 8) * 8, (t_cap // 8) * 8))
    chunks = pl.cdiv(c, t_chunk)
    need_mask = (c % t_chunk) != 0

    kernel = functools.partial(
        _dice_dense_kernel, smooth=float(smooth), power=power,
        c_total=c, t_chunk=t_chunk, need_mask=need_mask)

    out = pl.pallas_call(
        kernel,
        out_shape=jax.ShapeDtypeStruct((n, 1, 128), jnp.float32),
        grid_spec=pltpu.PrefetchScalarGridSpec(
            num_scalar_prefetch=0,
            grid=(n, chunks),
            in_specs=[
                pl.BlockSpec((1, t_chunk, 128), lambda b, k: (b, k, 0)),
                pl.BlockSpec((1, t_chunk, 128), lambda b, k: (b, k, 0)),
            ],
            out_specs=pl.BlockSpec((1, 1, 128), lambda b, k: (b, 0, 0)),
            scratch_shapes=[
                pltpu.VMEM((8, 128), jnp.float32),
                pltpu.VMEM((8, 128), jnp.float32),
            ],
        ),
        compiler_params=pltpu.CompilerParams(
            dimension_semantics=("parallel", "arbitrary"),
            vmem_limit_bytes=vmem_limit),
    )(predict3, target3)
    return out[:, 0, 0]


# ---------------------------------------------------------------------------
# General path: [N, D] row layout, ragged lane tiles masked in-kernel.
# ---------------------------------------------------------------------------
def _dice_rows_kernel(p_ref, t_ref, loss_ref, num_acc, den_acc, *,
                      smooth, power, d_total, tile, need_mask):
    k = pl.program_id(0)

    @pl.when(k == 0)
    def _init():
        num_acc[...] = jnp.zeros_like(num_acc)
        den_acc[...] = jnp.zeros_like(den_acc)

    p = p_ref[...].astype(jnp.float32)    # (N, tile)
    t = t_ref[...].astype(jnp.float32)

    prod = p * t
    den_part = _pow_term(p, power) + _pow_term(t, power)

    if need_mask:
        lane = jax.lax.broadcasted_iota(jnp.int32, prod.shape, 1)
        valid = (k * tile + lane) < d_total
        prod = jnp.where(valid, prod, 0.0)
        den_part = jnp.where(valid, den_part, 0.0)

    if tile >= 128:
        # Fold lane-groups into the 128-lane accumulators: static lane-aligned
        # slices + elementwise adds (VPU only; no per-step cross-lane reduce).
        num_p = prod[:, 0:128]
        den_p = den_part[:, 0:128]
        for g in range(1, tile // 128):
            num_p = num_p + prod[:, g * 128:(g + 1) * 128]
            den_p = den_p + den_part[:, g * 128:(g + 1) * 128]
    else:
        num_p = prod      # single narrow chunk (tile == D < 128)
        den_p = den_part

    num_acc[...] += num_p
    den_acc[...] += den_p

    @pl.when(k == pl.num_programs(0) - 1)
    def _finalize():
        num = jnp.sum(num_acc[...], axis=1, keepdims=True) + smooth
        den = jnp.sum(den_acc[...], axis=1, keepdims=True) + smooth
        loss_ref[...] = 1.0 - num / den


def _dice_rows(predict, target, smooth, power, vmem_limit):
    n, d = predict.shape
    itemsize = max(jnp.dtype(predict.dtype).itemsize,
                   jnp.dtype(target.dtype).itemsize)
    row_pad = ((n + 7) // 8) * 8
    acc_bytes = 2 * row_pad * 128 * 4
    # Per 128-lane group of a tile: 2 inputs x 2 pipeline buffers.
    per_group_bytes = 2 * 2 * row_pad * 128 * itemsize
    groups = max(1, min((vmem_limit // 2 - acc_bytes) // per_group_bytes, 64))

    if d < 128:
        tile = d
        acc_lanes = d
    else:
        tile = int(min(groups * 128, (d // 128) * 128))  # multiple of 128, <= D
        acc_lanes = 128
    chunks = pl.cdiv(d, tile)
    need_mask = (d % tile) != 0

    kernel = functools.partial(
        _dice_rows_kernel, smooth=float(smooth), power=power,
        d_total=d, tile=tile, need_mask=need_mask)

    out = pl.pallas_call(
        kernel,
        out_shape=jax.ShapeDtypeStruct((n, 1), jnp.float32),
        grid_spec=pltpu.PrefetchScalarGridSpec(
            num_scalar_prefetch=0,
            grid=(chunks,),
            in_specs=[
                pl.BlockSpec((n, tile), lambda k: (0, k)),
                pl.BlockSpec((n, tile), lambda k: (0, k)),
            ],
            out_specs=pl.BlockSpec((n, 1), lambda k: (0, 0)),
            scratch_shapes=[
                pltpu.VMEM((n, acc_lanes), jnp.float32),
                pltpu.VMEM((n, acc_lanes), jnp.float32),
            ],
        ),
        compiler_params=pltpu.CompilerParams(
            dimension_semantics=("arbitrary",),
            vmem_limit_bytes=vmem_limit),
    )(predict, target)
    return out[:, 0]


# ---------------------------------------------------------------------------
# Public wrapper (matches BinaryDiceLoss.forward semantics).
# ---------------------------------------------------------------------------
def binary_dice_loss(predict, target, smooth=1.0, p=2, reduction="mean"):
    assert predict.shape[0] == target.shape[0], \
        "predict & target batch size don't match"
    n = predict.shape[0]
    predict = predict.reshape(n, -1)
    target = target.reshape(n, -1)
    d = predict.shape[1]

    vmem_limit = _vmem_limit_bytes()

    if d % 128 == 0 and d >= 8 * 128:
        # Sublane-dense per-sample layout [N, D//128, 128].
        per_sample = _dice_dense(predict, target, smooth, p, vmem_limit)
    else:
        # Unaligned / small feature dims: row layout with in-kernel masking.
        per_sample = _dice_rows(predict, target, smooth, p, vmem_limit)

    if reduction == "mean":
        return jnp.mean(per_sample)
    elif reduction == "sum":
        return jnp.sum(per_sample)
    elif reduction == "none":
        return per_sample
    else:
        raise Exception("Unexpected reduction {}".format(reduction))


def _reference(predict, target, smooth=1.0, p=2, reduction="mean"):
    n = predict.shape[0]
    pr = predict.reshape(n, -1).astype(jnp.float32)
    tg = target.reshape(n, -1).astype(jnp.float32)
    num = jnp.sum(pr * tg, axis=1) + smooth
    den = jnp.sum(pr ** p + tg ** p, axis=1) + smooth
    loss = 1.0 - num / den
    if reduction == "mean":
        return jnp.mean(loss)
    elif reduction == "sum":
        return jnp.sum(loss)
    return loss


if __name__ == "__main__":
    key = jax.random.PRNGKey(0)
    k1, k2, k3, k4 = jax.random.split(key, 4)

    # Case 1: NCHW-ish [2, 4, 16, 16] (D=1024, 128-aligned -> dense path).
    predict = jax.nn.sigmoid(jax.random.normal(k1, (2, 4, 16, 16), jnp.float32))
    target = (jax.random.uniform(k2, (2, 4, 16, 16)) > 0.5).astype(jnp.float32)
    loss = binary_dice_loss(predict, target, smooth=1.0, p=2, reduction="mean")
    loss = jax.block_until_ready(loss)
    ref = _reference(predict, target, smooth=1.0, p=2, reduction="mean")
    assert jnp.allclose(loss, ref, rtol=1e-5, atol=1e-6), (loss, ref)

    # Case 2: non-128-aligned feature dim (D=300) -> masked row-layout path,
    # no jnp.pad copies; also exercises reduction='none'.
    predict2 = jax.nn.sigmoid(jax.random.normal(k3, (3, 300), jnp.float32))
    target2 = (jax.random.uniform(k4, (3, 300)) > 0.5).astype(jnp.float32)
    loss2 = binary_dice_loss(predict2, target2, smooth=1.0, p=2, reduction="none")
    loss2 = jax.block_until_ready(loss2)
    ref2 = _reference(predict2, target2, smooth=1.0, p=2, reduction="none")
    assert jnp.allclose(loss2, ref2, rtol=1e-5, atol=1e-6), (loss2, ref2)

    print("KERNEL_OK")
</pallas_src>

<mosaic_0001>
module attributes {stable_mosaic.version = 11 : i64} {
  func.func @_dice_dense_kernel(%arg0: i32, %arg1: i32, %arg2: memref<1x8x128xf32, #tpu.memory_space<vmem>>, %arg3: memref<1x8x128xf32, #tpu.memory_space<vmem>>, %arg4: memref<1x1x128xf32, #tpu.memory_space<vmem>>, %arg5: memref<8x128xf32, #tpu.memory_space<vmem>>, %arg6: memref<8x128xf32, #tpu.memory_space<vmem>>) attributes {dimension_semantics = [#tpu.dimension_semantics<parallel>, #tpu.dimension_semantics<arbitrary>], iteration_bounds = array<i64: 2, 1>, scalar_prefetch = 0 : i64, scratch_operands = 2 : i64, tpu.core_type = #tpu.core_type<tc>, window_params = [{transform_indices = @transform_0, window_bounds = array<i64: 1, 8, 128>}, {transform_indices = @transform_1, window_bounds = array<i64: 1, 8, 128>}, {transform_indices = @transform_2, window_bounds = array<i64: 1, 1, 128>}]} {
    %c0_i32 = arith.constant 0 : i32
    %0 = arith.cmpi eq, %arg1, %c0_i32 : i32
    %1 = arith.extui %0 : i1 to i32
    %c0_i32_0 = arith.constant 0 : i32
    %2 = arith.cmpi ne, %1, %c0_i32_0 : i32
    scf.if %2 {
      %cst_17 = arith.constant 0.000000e+00 : f32
      %24 = vector.broadcast %cst_17 : f32 to vector<8x128xf32>
      %c0_18 = arith.constant 0 : index
      %c0_19 = arith.constant 0 : index
      %25 = vector.load %arg5[%c0_18, %c0_19] : memref<8x128xf32, #tpu.memory_space<vmem>>, vector<8x128xf32>
      tpu.vector_store %arg5[%c0_18, %c0_19], %24 {strides = array<i32>} : memref<8x128xf32, #tpu.memory_space<vmem>>, vector<8x128xf32>,
      %cst_20 = arith.constant 0.000000e+00 : f32
      %26 = vector.broadcast %cst_20 : f32 to vector<8x128xf32>
      %c0_21 = arith.constant 0 : index
      %c0_22 = arith.constant 0 : index
      %27 = vector.load %arg6[%c0_21, %c0_22] : memref<8x128xf32, #tpu.memory_space<vmem>>, vector<8x128xf32>
      tpu.vector_store %arg6[%c0_21, %c0_22], %26 {strides = array<i32>} : memref<8x128xf32, #tpu.memory_space<vmem>>, vector<8x128xf32>,
    } else {
    }
    %c0 = arith.constant 0 : index
    %c0_1 = arith.constant 0 : index
    %c0_2 = arith.constant 0 : index
    %3 = vector.load %arg2[%c0, %c0_1, %c0_2] : memref<1x8x128xf32, #tpu.memory_space<vmem>>, vector<1x8x128xf32>
    %4 = vector.shape_cast %3 : vector<1x8x128xf32> to vector<8x128xf32>
    %c0_3 = arith.constant 0 : index
    %c0_4 = arith.constant 0 : index
    %c0_5 = arith.constant 0 : index
    %5 = vector.load %arg3[%c0_3, %c0_4, %c0_5] : memref<1x8x128xf32, #tpu.memory_space<vmem>>, vector<1x8x128xf32>
    %6 = vector.shape_cast %5 : vector<1x8x128xf32> to vector<8x128xf32>
    %7 = arith.mulf %4, %6 : vector<8x128xf32>
    %8 = arith.mulf %4, %4 : vector<8x128xf32>
    %9 = arith.mulf %6, %6 : vector<8x128xf32>
    %10 = arith.addf %8, %9 : vector<8x128xf32>
    %c0_6 = arith.constant 0 : index
    %c0_7 = arith.constant 0 : index
    %11 = vector.load %arg5[%c0_6, %c0_7] : memref<8x128xf32, #tpu.memory_space<vmem>>, vector<8x128xf32>
    %12 = vector.shape_cast %7 : vector<8x128xf32> to vector<1x8x128xf32>
    %cst = arith.constant dense<0.000000e+00> : vector<8x128xf32>
    %13 = vector.multi_reduction <add>, %12, %cst [0] : vector<1x8x128xf32> to vector<8x128xf32>
    %14 = arith.addf %11, %13 : vector<8x128xf32>
    %c0_8 = arith.constant 0 : index
    %c0_9 = arith.constant 0 : index
    %15 = vector.load %arg5[%c0_8, %c0_9] : memref<8x128xf32, #tpu.memory_space<vmem>>, vector<8x128xf32>
    tpu.vector_store %arg5[%c0_8, %c0_9], %14 {strides = array<i32>} : memref<8x128xf32, #tpu.memory_space<vmem>>, vector<8x128xf32>,
    %c0_10 = arith.constant 0 : index
    %c0_11 = arith.constant 0 : index
    %16 = vector.load %arg6[%c0_10, %c0_11] : memref<8x128xf32, #tpu.memory_space<vmem>>, vector<8x128xf32>
    %17 = vector.shape_cast %10 : vector<8x128xf32> to vector<1x8x128xf32>
    %cst_12 = arith.constant dense<0.000000e+00> : vector<8x128xf32>
    %18 = vector.multi_reduction <add>, %17, %cst_12 [0] : vector<1x8x128xf32> to vector<8x128xf32>
    %19 = arith.addf %16, %18 : vector<8x128xf32>
    %c0_13 = arith.constant 0 : index
    %c0_14 = arith.constant 0 : index
    %20 = vector.load %arg6[%c0_13, %c0_14] : memref<8x128xf32, #tpu.memory_space<vmem>>, vector<8x128xf32>
    tpu.vector_store %arg6[%c0_13, %c0_14], %19 {strides = array<i32>} : memref<8x128xf32, #tpu.memory_space<vmem>>, vector<8x128xf32>,
    %c0_i32_15 = arith.constant 0 : i32
    %21 = arith.cmpi eq, %arg1, %c0_i32_15 : i32
    %22 = arith.extui %21 : i1 to i32
    %c0_i32_16 = arith.constant 0 : i32
    %23 = arith.cmpi ne, %22, %c0_i32_16 : i32
    scf.if %23 {
      %c0_17 = arith.constant 0 : index
      %c0_18 = arith.constant 0 : index
      %24 = vector.load %arg5[%c0_17, %c0_18] : memref<8x128xf32, #tpu.memory_space<vmem>>, vector<8x128xf32>
      %cst_19 = arith.constant dense<0.000000e+00> : vector<128xf32>
      %25 = vector.multi_reduction <add>, %24, %cst_19 [0] : vector<8x128xf32> to vector<128xf32>
      %26 = vector.shape_cast %25 : vector<128xf32> to vector<1x128xf32>
      %cst_20 = arith.constant dense<0.000000e+00> : vector<1xf32>
      %27 = vector.multi_reduction <add>, %26, %cst_20 [1] : vector<1x128xf32> to vector<1xf32>
      %28 = vector.shape_cast %27 : vector<1xf32> to vector<1x1xf32>
      %cst_21 = arith.constant 1.000000e+00 : f32
      %29 = vector.broadcast %cst_21 : f32 to vector<1x1xf32>
      %30 = arith.addf %28, %29 : vector<1x1xf32>
      %c0_22 = arith.constant 0 : index
      %c0_23 = arith.constant 0 : index
      %31 = vector.load %arg6[%c0_22, %c0_23] : memref<8x128xf32, #tpu.memory_space<vmem>>, vector<8x128xf32>
      %cst_24 = arith.constant dense<0.000000e+00> : vector<128xf32>
      %32 = vector.multi_reduction <add>, %31, %cst_24 [0] : vector<8x128xf32> to vector<128xf32>
      %33 = vector.shape_cast %32 : vector<128xf32> to vector<1x128xf32>
      %cst_25 = arith.constant dense<0.000000e+00> : vector<1xf32>
      %34 = vector.multi_reduction <add>, %33, %cst_25 [1] : vector<1x128xf32> to vector<1xf32>
      %35 = vector.shape_cast %34 : vector<1xf32> to vector<1x1xf32>
      %cst_26 = arith.constant 1.000000e+00 : f32
      %36 = vector.broadcast %cst_26 : f32 to vector<1x1xf32>
      %37 = arith.addf %35, %36 : vector<1x1xf32>
      %38 = arith.divf %30, %37 : vector<1x1xf32>
      %cst_27 = arith.constant 1.000000e+00 : f32
      %39 = vector.broadcast %cst_27 : f32 to vector<1x1xf32>
      %40 = arith.subf %39, %38 : vector<1x1xf32>
      %41 = vector.shape_cast %40 : vector<1x1xf32> to vector<1x1xf32>
      %42 = vector.broadcast %41 : vector<1x1xf32> to vector<1x128xf32>
      %c0_28 = arith.constant 0 : index
      %c0_29 = arith.constant 0 : index
      %c0_30 = arith.constant 0 : index
      %43 = vector.load %arg4[%c0_28, %c0_29, %c0_30] : memref<1x1x128xf32, #tpu.memory_space<vmem>>, vector<1x1x128xf32>
      %44 = vector.shape_cast %43 : vector<1x1x128xf32> to vector<1x128xf32>
      %45 = vector.shape_cast %42 : vector<1x128xf32> to vector<1x1x128xf32>
      tpu.vector_store %arg4[%c0_28, %c0_29, %c0_30], %45 {strides = array<i32>} : memref<1x1x128xf32, #tpu.memory_space<vmem>>, vector<1x1x128xf32>,
    } else {
    }
    return
  }
  func.func @transform_0(%arg0: i32, %arg1: i32) -> (i32, i32, i32) {
    %c0_i32 = arith.constant 0 : i32
    %c0_i32_0 = arith.constant 0 : i32
    return %arg0, %arg1, %c0_i32 : i32, i32, i32
  }
  func.func @transform_1(%arg0: i32, %arg1: i32) -> (i32, i32, i32) {
    %c0_i32 = arith.constant 0 : i32
    %c0_i32_0 = arith.constant 0 : i32
    return %arg0, %arg1, %c0_i32 : i32, i32, i32
  }
  func.func @transform_2(%arg0: i32, %arg1: i32) -> (i32, i32, i32) {
    %c0_i32 = arith.constant 0 : i32
    %c0_i32_0 = arith.constant 0 : i32
    %c0_i32_1 = arith.constant 0 : i32
    return %arg0, %c0_i32, %c0_i32_0 : i32, i32, i32
  }
}

</mosaic_0001>

<llo_original>
// kernel: tpu_custom_call.1
$region0: #{tpu_custom_call.1}
  #allocation0 [shape = 'u32[]', space=smem, size = 0x4, offset = 0x4, fixed_abs, tag = 'smem constant byte address 0x4 - core index']
  #allocation1 [shape = 'u32[144,128]{1,0:T(1,128)}', space=vmem, size = 0x12000, scoped, tag = 'internal scratch']
  #allocation2 [shape = 'f32[8,128]{1,0:T(8,128)}', space=vmem, size = 0x1000, scoped, tag = 'scratch operand']
  #allocation3 [shape = 'f32[8,128]{1,0:T(8,128)}', space=vmem, size = 0x1000, scoped, tag = 'scratch operand']
  %s0 = inlined_call_operand.hbm [shape: f32[2,8,128], index: 0, kind: input, shape index: {}]
  %s1 = inlined_call_operand.hbm [shape: f32[2,8,128], index: 1, kind: input, shape index: {}]
  %s2 = inlined_call_operand.hbm [shape: f32[2,1,128], index: 2, kind: output, shape index: {}]
  %s3 = sld [smem:[#allocation0]]
  $region57: #{tpu_custom_call.1} parent=0
    _
  %s5 = ssub.s32 1, %s3
  %s6 = scalar_select 0, %s5, %s3
  $region1: #{tpu_custom_call.1} parent=0
    #allocation4 [shape = 'u8[8192]{0}', space=vmem, size = 0x2000, scoped, tag = 'input window, operand 0']
    #allocation5 [shape = 's32[2]{0}', space=sflag, size = 0x8, scoped, tag = 'scoped memory for tpu_custom_call.1']
    #allocation6 [shape = 's32[2]{0}', space=sflag, size = 0x8, scoped, tag = 'scoped memory for tpu_custom_call.1']
    #allocation7 [shape = 'u8[8192]{0}', space=vmem, size = 0x2000, scoped, tag = 'input window, operand 1']
    #allocation8 [shape = 's32[2]{0}', space=sflag, size = 0x8, scoped, tag = 'scoped memory for tpu_custom_call.1']
    #allocation9 [shape = 'u8[1024]{0}', space=vmem, size = 0x400, scoped, tag = 'output window, operand 0']
    %7 = vsyncpa [#allocation5], 0
    %s8 = scalar_lea.sflag [#allocation5], 1
    %9 = vsyncpa %s8, 0
    %10 = vsyncpa [#allocation8], 0
    %s11 = scalar_lea.sflag [#allocation8], 1
    %12 = vsyncpa %s11, 0
    %13 = vsyncpa [#allocation6], 0
    %s14 = scalar_lea.sflag [#allocation6], 1
    %15 = vsyncpa %s14, 0
    loop: start=0, step=1, limit=4
    $region2: #{tpu_custom_call.1} parent=1 // loop_pre_header
      _
    $region3: #{tpu_custom_call.1} parent=1 // loop_header
      %s17 = sphi 0, %s21
      %p18 = scmp.ge.s32.totalorder %s17, 4
      %s24 = sphi 0, %s36
      %s25 = sphi 0, %s32
      %s26 = sphi 0, %s24
      %s27 = sphi 0, %s25
      %s28 = sphi 0, %s26
      %s29 = sphi 0, %s27
      %s41 = sphi 0, %s43
      %s44 = sphi 0, %s41
      %s45 = sphi 0, %s44
      %s61 = sphi 0, %s45
      %s69 = sphi 0, %s71
      %s72 = sphi 0, %s69
      %s73 = sphi 0, %s72
      %s89 = sphi 0, %s73
      %s95 = sphi 0, %s97
      %s98 = sphi 0, %s95
      %s99 = sphi 0, %s98
      %s115 = sphi 0, %s99
    $region4: #{tpu_custom_call.1} parent=1 // loop_header_branch
      %20 = sbr.rel (%p18) target = $region8
    $region5: #{tpu_custom_call.1} parent=1 // loop_body
      %s22 = ssub.s32 %s17, 1
      %s23 = ssub.s32 %s17, 2
      %s30 = sadd.s32 1, %s25
      %p31 = scmp.ge.s32.totalorder %s30, 1
      %s32 = scalar_select %p31, 0, %s30
      %s33 = sadd.s32 1, %s24
      %s34 = scalar_select %p31, %s33, %s24
      %p35 = scmp.ge.s32.totalorder %s34, 2
      %s36 = scalar_select %p35, 0, %s34
      %s37 = ssub.s32 %s24, %s36
      %s38 = ssub.s32 %s25, %s32
      %s39 = sor.u32 %s37, %s38
      %p40 = scmp.eq.s32.totalorder %s39, 0
      %s42 = sadd.s32 %s41, 1
      %s43 = scalar_select %p40, %s41, %s42
      %p46 = pneg %p40
      %p47 = scmp.eq.s32.totalorder %s17, 1
      %p48 = por %p46, %p47
      %p49 = scmp.ne.s32.totalorder %s41, %s44
      %p50 = scmp.eq.s32.totalorder %s17, 0
      %p51 = por %p49, %p50
      %p52 = scmp.ne.s32.totalorder %s41, %s44
      %p53 = scmp.eq.s32.totalorder %s22, 1
      %p54 = por %p52, %p53
      %p55 = scmp.ne.s32.totalorder %s44, %s45
      %p56 = scmp.eq.s32.totalorder %s22, 0
      %p57 = por %p55, %p56
      %p58 = scmp.ne.s32.totalorder %s44, %s45
      %p59 = scmp.eq.s32.totalorder %s23, 1
      %p60 = por %p58, %p59
      %p62 = scmp.ne.s32.totalorder %s45, %s61
      %p63 = scmp.eq.s32.totalorder %s23, 0
      %p64 = por %p62, %p63
      %s65 = ssub.s32 %s24, %s36
      %s66 = ssub.s32 %s25, %s32
      %s67 = sor.u32 %s65, %s66
      %p68 = scmp.eq.s32.totalorder %s67, 0
      %s70 = sadd.s32 %s69, 1
      %s71 = scalar_select %p68, %s69, %s70
      %p74 = pneg %p68
      %p75 = scmp.eq.s32.totalorder %s17, 1
      %p76 = por %p74, %p75
      %p77 = scmp.ne.s32.totalorder %s69, %s72
      %p78 = scmp.eq.s32.totalorder %s17, 0
      %p79 = por %p77, %p78
      %p80 = scmp.ne.s32.totalorder %s69, %s72
      %p81 = scmp.eq.s32.totalorder %s22, 1
      %p82 = por %p80, %p81
      %p83 = scmp.ne.s32.totalorder %s72, %s73
      %p84 = scmp.eq.s32.totalorder %s22, 0
      %p85 = por %p83, %p84
      %p86 = scmp.ne.s32.totalorder %s72, %s73
      %p87 = scmp.eq.s32.totalorder %s23, 1
      %p88 = por %p86, %p87
      %p90 = scmp.ne.s32.totalorder %s73, %s89
      %p91 = scmp.eq.s32.totalorder %s23, 0
      %p92 = por %p90, %p91
      %s93 = ssub.s32 %s24, %s36
      %p94 = scmp.eq.s32.totalorder %s93, 0
      %s96 = sadd.s32 %s95, 1
      %s97 = scalar_select %p94, %s95, %s96
      %p100 = pneg %p94
      %p101 = scmp.eq.s32.totalorder %s17, 1
      %p102 = por %p100, %p101
      %p103 = scmp.ne.s32.totalorder %s95, %s98
      %p104 = scmp.eq.s32.totalorder %s17, 0
      %p105 = por %p103, %p104
      %p106 = scmp.ne.s32.totalorder %s95, %s98
      %p107 = scmp.eq.s32.totalorder %s22, 1
      %p108 = por %p106, %p107
      %p109 = scmp.ne.s32.totalorder %s98, %s99
      %p110 = scmp.eq.s32.totalorder %s22, 0
      %p111 = por %p109, %p110
      %p112 = scmp.ne.s32.totalorder %s98, %s99
      %p113 = scmp.eq.s32.totalorder %s23, 1
      %p114 = por %p112, %p113
      %p116 = scmp.ne.s32.totalorder %s99, %s115
      %p117 = scmp.eq.s32.totalorder %s23, 0
      %p118 = por %p116, %p117
      %p119 = scmp.le.s32.totalorder 1, %s17
      %p120 = scmp.lt.s32.totalorder %s17, 3
      %p121 = pnand %p119, %p120
      %p122 = pneg %p121
      // Predicated region
      $region9: #{tpu_custom_call.1} parent=5 // pred_check
        _
      $region10: #{tpu_custom_call.1} parent=5 // pred_check_branch
        %124 = sbr.rel (%p121) target = $region12
      $region11: #{tpu_custom_call.1} parent=5 // pred_region
        %s125 = ssub.s32 %s17, 1
      $region12: #{tpu_custom_call.1} parent=5 // pred_fallthru
        _
      %p126 = scmp.lt.s32.totalorder %s17, 2
      // Predicated region
      $region13: #{tpu_custom_call.1} parent=5 // pred_check
        %p127 = pneg %p126
      $region14: #{tpu_custom_call.1} parent=5 // pred_check_branch
        %129 = sbr.rel (%p127) target = $region16
      $region15: #{tpu_custom_call.1} parent=5 // pred_region
        // Predicated region
        $region17: #{tpu_custom_call.1} parent=15 // pred_check
          %p130 = pneg %p51
        $region18: #{tpu_custom_call.1} parent=15 // pred_check_branch
          %132 = sbr.rel (%p130) target = $region20
        $region19: #{tpu_custom_call.1} parent=15 // pred_region
          %s133 = sand.u32 %s41, 1
          %s134 = scalar_lea.sflag [#allocation5], %s133
          %s135 = sand.u32 %s41, 1
          %s136 = smul.addr %s135, 8
          %s137 = scalar_lea.vmem [#allocation4], %s136
          %s139 = ssub.s32 128, 128
          %140 = vsyncadd %s134, %s139
          %s141 = sadd.s32 %s25, %s24
          %s142 = smul.addr %s141, 128
          %s143 = scalar_lea.hbm %s0, %s142
          %s145 = sshll.u32 %s137, 4
          %s146 = int_to_ptr.vmem [resolvable:$true] %s145
          %148 = dma.hbm_to_vmem [thread:$0]  %s143, 128, %s146, %s134
        $region20: #{tpu_custom_call.1} parent=15 // pred_fallthru
          _
        // Predicated region
        $region21: #{tpu_custom_call.1} parent=15 // pred_check
          %p149 = pneg %p79
        $region22: #{tpu_custom_call.1} parent=15 // pred_check_branch
          %151 = sbr.rel (%p149) target = $region24
        $region23: #{tpu_custom_call.1} parent=15 // pred_region
          %s152 = sand.u32 %s69, 1
          %s153 = scalar_lea.sflag [#allocation8], %s152
          %s154 = sand.u32 %s69, 1
          %s155 = smul.addr %s154, 8
          %s156 = scalar_lea.vmem [#allocation7], %s155
          %s158 = ssub.s32 128, 128
          %159 = vsyncadd %s153, %s158
          %s160 = sadd.s32 %s25, %s24
          %s161 = smul.addr %s160, 128
          %s162 = scalar_lea.hbm %s1, %s161
          %s164 = sshll.u32 %s156, 4
          %s165 = int_to_ptr.vmem [resolvable:$true] %s164
          %167 = dma.hbm_to_vmem [thread:$0]  %s162, 128, %s165, %s153
        $region24: #{tpu_custom_call.1} parent=15 // pred_fallthru
          _
      $region16: #{tpu_custom_call.1} parent=5 // pred_fallthru
        _
      %p168 = scmp.le.s32.totalorder 1, %s17
      %p169 = scmp.lt.s32.totalorder %s17, 3
      %p170 = pnand %p168, %p169
      %p171 = pneg %p170
      // Predicated region
      $region25: #{tpu_custom_call.1} parent=5 // pred_check
        _
      $region26: #{tpu_custom_call.1} parent=5 // pred_check_branch
        %173 = sbr.rel (%p170) target = $region28
      $region27: #{tpu_custom_call.1} parent=5 // pred_region
        %s174 = ssub.s32 %s17, 1
        %s175 = sand.u32 %s44, 1
        %s176 = scalar_lea.sflag [#allocation5], %s175
        %s177 = sand.u32 %s44, 1
        %s178 = smul.addr %s177, 8
        %s179 = scalar_lea.vmem [#allocation4], %s178
        // Predicated region
        $region29: #{tpu_custom_call.1} parent=27 // pred_check
          %p180 = pneg %p57
        $region30: #{tpu_custom_call.1} parent=27 // pred_check_branch
          %182 = sbr.rel (%p180) target = $region32
        $region31: #{tpu_custom_call.1} parent=27 // pred_region
          %183 = dma.done %s176, 128
        $region32: #{tpu_custom_call.1} parent=27 // pred_fallthru
          _
        %s184 = sand.u32 %s72, 1
        %s185 = scalar_lea.sflag [#allocation8], %s184
        %s186 = sand.u32 %s72, 1
        %s187 = smul.addr %s186, 8
        %s188 = scalar_lea.vmem [#allocation7], %s187
        // Predicated region
        $region33: #{tpu_custom_call.1} parent=27 // pred_check
          %p189 = pneg %p85
        $region34: #{tpu_custom_call.1} parent=27 // pred_check_branch
          %191 = sbr.rel (%p189) target = $region36
        $region35: #{tpu_custom_call.1} parent=27 // pred_region
          %192 = dma.done %s185, 128
        $region36: #{tpu_custom_call.1} parent=27 // pred_fallthru
          _
        %s193 = sand.u32 %s44, 1
        %s194 = scalar_lea.sflag [#allocation5], %s193
        %s195 = sand.u32 %s44, 1
        %s196 = smul.addr %s195, 8
        %s197 = scalar_lea.vmem [#allocation4], %s196
        %p198 = pneg %p57
        %p199 = pneg %p54
        %s200 = sand.u32 %s72, 1
        %s201 = scalar_lea.sflag [#allocation8], %s200
        %s202 = sand.u32 %s72, 1
        %s203 = smul.addr %s202, 8
        %s204 = scalar_lea.vmem [#allocation7], %s203
        %p205 = pneg %p85
        %p206 = pneg %p82
        %p207 = pneg %p111
        %p208 = pneg %p108
        %s209 = sand.u32 %s98, 1
        %s210 = scalar_lea.sflag [#allocation6], %s209
        %s211 = sand.u32 %s98, 1
        %s212 = scalar_lea.vmem [#allocation9], %s211
        %p213 = scmp.eq.s32.totalorder %s27, 0
        // Predicated region
        $region37: #{tpu_custom_call.1} parent=27 // pred_check
          %p214 = pneg %p213
        $region38: #{tpu_custom_call.1} parent=27 // pred_check_branch
          %216 = sbr.rel (%p214) target = $region40
        $region39: #{tpu_custom_call.1} parent=27 // pred_region
          %217 = vst [vmem:[#allocation2] sm:$0xff] 0.0
          %218 = vst [vmem:[#allocation3] sm:$0xff] 0.0
        $region40: #{tpu_custom_call.1} parent=27 // pred_fallthru
          _
        %v219 = vld [vmem:[%s179] sm:$0xff]
        %v220 = vld [vmem:[%s188] sm:$0xff]
        %v221 = vmul.f32 %v219, %v220
        %v222 = vmul.f32 %v219, %v219
        %v223 = vmul.f32 %v220, %v220
        %v224 = vadd.f32 %v222, %v223
        %v225 = vld [vmem:[#allocation2] sm:$0xff]
        %v226 = vadd.f32 %v221, 0.0
        %v227 = vadd.f32 %v225, %v226
        %228 = vst [vmem:[#allocation2] sm:$0xff] %v227
        %v229 = vld [vmem:[#allocation3] sm:$0xff]
        %v230 = vadd.f32 %v224, 0.0
        %v231 = vadd.f32 %v229, %v230
        %232 = vst [vmem:[#allocation3] sm:$0xff] %v231
        // Predicated region
        $region41: #{tpu_custom_call.1} parent=27 // pred_check
          %p233 = pneg %p213
        $region42: #{tpu_custom_call.1} parent=27 // pred_check_branch
          %235 = sbr.rel (%p233) target = $region44
        $region43: #{tpu_custom_call.1} parent=27 // pred_region
          %v236 = vld [vmem:[#allocation2] sm:$0xff]
          %v237 = vrot.slane %v236, 4
          %v238 = vadd.f32 %v236, %v237
          %v239 = vrot.slane %v238, 2
          %v240 = vadd.f32 %v238, %v239
          %v241 = vrot.slane %v240, 1
          %v242 = vadd.f32 %v240, %v241
          %243 = vadd.xlane.f32.xlu0 %v242
          %v244 = vpop.xlane.xlu0 %243
          %v245 = vadd.f32 %v244, 1.0
          %v246 = vld [vmem:[#allocation3] sm:$0xff]
          %v247 = vrot.slane %v246, 4
          %v248 = vadd.f32 %v246, %v247
          %v249 = vrot.slane %v248, 2
          %v250 = vadd.f32 %v248, %v249
          %v251 = vrot.slane %v250, 1
          %v252 = vadd.f32 %v250, %v251
          %253 = vadd.xlane.f32.xlu0 %v252
          %v254 = vpop.xlane.xlu0 %253
          %v255 = vadd.f32 %v254, 1.0
          %v256 = vrcp.pop %v255
          %v257 = vmul.f32 %v245, %v256
          %v258 = vsub.f32 1.0, %v257
          %259 = vst [vmem:[%s212] sm:$0x1] %v258
        $region44: #{tpu_custom_call.1} parent=27 // pred_fallthru
          _
        %s260 = sand.u32 %s98, 1
        %s261 = scalar_lea.sflag [#allocation6], %s260
        %s262 = sand.u32 %s98, 1
        %s263 = scalar_lea.vmem [#allocation9], %s262
        // Predicated region
        $region45: #{tpu_custom_call.1} parent=27 // pred_check
          %p264 = pneg %p108
        $region46: #{tpu_custom_call.1} parent=27 // pred_check_branch
          %266 = sbr.rel (%p264) target = $region48
        $region47: #{tpu_custom_call.1} parent=27 // pred_region
          %s268 = ssub.s32 16, 16
          %269 = vsyncadd %s261, %s268
          %s270 = smul.addr %s26, 16
          %s271 = scalar_lea.hbm %s2, %s270
          %s273 = sshll.u32 %s263, 4
          %s274 = int_to_ptr.vmem [resolvable:$true] %s273
          %276 = dma.vmem_to_hbm [thread:$0]  %s274, 16, %s271, %s261
        $region48: #{tpu_custom_call.1} parent=27 // pred_fallthru
          _
      $region28: #{tpu_custom_call.1} parent=5 // pred_fallthru
        _
      %p277 = scmp.le.s32.totalorder 2, %s17
      // Predicated region
      $region49: #{tpu_custom_call.1} parent=5 // pred_check
        %p278 = pneg %p277
      $region50: #{tpu_custom_call.1} parent=5 // pred_check_branch
        %280 = sbr.rel (%p278) target = $region52
      $region51: #{tpu_custom_call.1} parent=5 // pred_region
        %s281 = ssub.s32 %s17, 2
        // Predicated region
        $region53: #{tpu_custom_call.1} parent=51 // pred_check
          %p282 = pneg %p114
        $region54: #{tpu_custom_call.1} parent=51 // pred_check_branch
          %284 = sbr.rel (%p282) target = $region56
        $region55: #{tpu_custom_call.1} parent=51 // pred_region
          %s285 = sand.u32 %s99, 1
          %s286 = scalar_lea.sflag [#allocation6], %s285
          %s287 = sand.u32 %s99, 1
          %s288 = scalar_lea.vmem [#allocation9], %s287
          %289 = dma.done %s286, 16
        $region56: #{tpu_custom_call.1} parent=51 // pred_fallthru
          _
      $region52: #{tpu_custom_call.1} parent=5 // pred_fallthru
        _
    $region6: #{tpu_custom_call.1} parent=1 // loop_footer
      %s21 = sadd.s32 1, %s17
    $region7: #{tpu_custom_call.1} parent=1 // loop_footer_branch
      %16 = sbr.rel target = $region3
    $region8: #{tpu_custom_call.1} parent=1 // loop_exit
      _
    %290 = vsyncpa [#allocation5], 1
    %s291 = scalar_lea.sflag [#allocation5], 1
    %292 = vsyncpa %s291, 1
    %293 = vsyncpa [#allocation8], 1
    %s294 = scalar_lea.sflag [#allocation8], 1
    %295 = vsyncpa %s294, 1
    %296 = vsyncpa [#allocation6], 1
    %s297 = scalar_lea.sflag [#allocation6], 1
    %298 = vsyncpa %s297, 1

</llo_original>
